<compile_context>
chip_gen: v7x
topology: tpu7x:2x2x1
jax: 0.10.0
libtpu: 0.0.40
codegen_flags: <defaults>
</compile_context>

<pallas_src>
import jax
import jax.numpy as jnp
from jax import lax
from jax.experimental import pallas as pl
from jax.experimental.pallas import tpu as pltpu


def _round_up(n, m):
    return ((n + m - 1) // m) * m


def _make_policy_kernel(d_in, pw):
    """Kernel closure over static feature width / padded lane width."""
    r_w2 = d_in        # first row of (padded) w2 in the weight slab
    r_w3 = d_in + pw   # first row of (padded) w3 in the weight slab

    def kernel(x_ref, vec_ref, w_ref, o_ref):
        # --- LayerNorm over the true feature width d_in (eps=1e-5, affine) ---
        x = x_ref[...].astype(jnp.float32)                       # (Bblk, d_in)
        mean = jnp.mean(x, axis=-1, keepdims=True)
        xc = x - mean
        var = jnp.mean(xc * xc, axis=-1, keepdims=True)
        xhat = xc * lax.rsqrt(var + 1e-5)
        h = xhat * vec_ref[0:1, 0:d_in] + vec_ref[1:2, 0:d_in]   # gamma / beta

        # --- Linear -> ReLU -> Linear -> ReLU -> Linear (lane-padded to pw) ---
        h = jnp.dot(h, w_ref[0:d_in, :], preferred_element_type=jnp.float32)
        h = jnp.maximum(h + vec_ref[2:3, :], 0.0)                # (Bblk, pw)
        h = jnp.dot(h, w_ref[r_w2:r_w2 + pw, :],
                    preferred_element_type=jnp.float32)
        h = jnp.maximum(h + vec_ref[3:4, :], 0.0)
        out = jnp.dot(h, w_ref[r_w3:r_w3 + pw, :],
                      preferred_element_type=jnp.float32)
        out = out + vec_ref[4:5, :]

        # --- head: tanh on first 3 outputs, relu + 1e-5 on the rest ---
        head_mask = vec_ref[5:6, :] > 0.5                        # (1, pw) bool
        o_ref[...] = jnp.where(head_mask,
                               jnp.tanh(out),
                               jnp.maximum(out, 0.0) + 1e-5).astype(o_ref.dtype)

    return kernel


def sat_col_avoid_policy(x, params, *, block_b=128):
    """x: (B, d_in) or (d_in,) observations -> (B, d_out) or (d_out,) actions."""
    gamma, beta, w1, b1, w2, b2, w3, b3 = params
    d_in, h1 = w1.shape
    h2 = w2.shape[1]
    d_out = w3.shape[1]
    pw = max(128, _round_up(max(h1, h2, d_out), 128))   # padded lane width
    assert h1 <= pw and h2 <= pw and d_out <= pw

    single = (x.ndim == 1)
    xb = x.reshape(1, d_in) if single else x
    B = xb.shape[0]

    # Pick an effective batch block and pad B up to a multiple of it.
    blk = min(block_b, _round_up(max(B, 1), 8))
    Bp = _round_up(B, blk)
    xp = jnp.zeros((Bp, d_in), jnp.float32).at[:B].set(xb.astype(jnp.float32))

    # --- vec slab: gamma | beta | b1 | b2 | b3 | head-mask (8, pw) ---
    vec = jnp.zeros((8, pw), jnp.float32)
    vec = vec.at[0, :d_in].set(gamma)
    vec = vec.at[1, :d_in].set(beta)
    vec = vec.at[2, :h1].set(b1)
    vec = vec.at[3, :h2].set(b2)
    vec = vec.at[4, :d_out].set(b3)
    vec = vec.at[5, :3].set(1.0)   # tanh lanes

    # --- weight slab: w1 (d_in rows) | w2 (pw rows) | w3 (pw rows), pw lanes ---
    wsl = jnp.zeros((d_in + 2 * pw, pw), jnp.float32)
    wsl = wsl.at[0:d_in, 0:h1].set(w1)
    wsl = wsl.at[d_in:d_in + h1, 0:h2].set(w2)
    wsl = wsl.at[d_in + pw:d_in + pw + h2, 0:d_out].set(w3)

    grid = (Bp // blk,)
    out = pl.pallas_call(
        _make_policy_kernel(d_in, pw),
        out_shape=jax.ShapeDtypeStruct((Bp, pw), jnp.float32),
        grid_spec=pltpu.PrefetchScalarGridSpec(
            num_scalar_prefetch=0,
            grid=grid,
            in_specs=[
                pl.BlockSpec((blk, d_in), lambda i: (i, 0)),          # x tile
                pl.BlockSpec((8, pw), lambda i: (0, 0)),              # vec slab (resident)
                pl.BlockSpec((d_in + 2 * pw, pw), lambda i: (0, 0)),  # weight slab (resident)
            ],
            out_specs=pl.BlockSpec((blk, pw), lambda i: (i, 0)),
        ),
        compiler_params=pltpu.CompilerParams(
            dimension_semantics=("parallel",)),
    )(xp, vec, wsl)

    out = out[:B, :d_out]
    return out[0] if single else out


def init_params(key, init_layer, hidden_layer_1, hidden_layer_2, output_layer):
    """Deterministic synthetic parameters (shapes from the module __init__)."""
    ks = jax.random.split(key, 6)
    gamma = jnp.ones((init_layer,), jnp.float32)      # LayerNorm default init
    beta = jnp.zeros((init_layer,), jnp.float32)
    # Linear weights already transposed to (in, out) for y = x @ W + b
    w1 = 0.1 * jax.random.normal(ks[0], (init_layer, hidden_layer_1), jnp.float32)
    b1 = 0.1 * jax.random.normal(ks[1], (hidden_layer_1,), jnp.float32)
    w2 = 0.1 * jax.random.normal(ks[2], (hidden_layer_1, hidden_layer_2), jnp.float32)
    b2 = 0.1 * jax.random.normal(ks[3], (hidden_layer_2,), jnp.float32)
    w3 = 0.1 * jax.random.normal(ks[4], (hidden_layer_2, output_layer), jnp.float32)
    b3 = 0.1 * jax.random.normal(ks[5], (output_layer,), jnp.float32)
    return (gamma, beta, w1, b1, w2, b2, w3, b3)


def reference_forward(x, params):
    """Pure-JAX reference mirroring the PyTorch forward (batched or 1-D)."""
    gamma, beta, w1, b1, w2, b2, w3, b3 = params
    mean = jnp.mean(x, axis=-1, keepdims=True)
    var = jnp.mean((x - mean) ** 2, axis=-1, keepdims=True)
    h = (x - mean) / jnp.sqrt(var + 1e-5) * gamma + beta
    h = jnp.maximum(h @ w1 + b1, 0.0)
    h = jnp.maximum(h @ w2 + b2, 0.0)
    out = h @ w3 + b3
    head = jnp.tanh(out[..., :3])
    tail = jnp.maximum(out[..., 3:], 0.0) + 1e-5
    return jnp.concatenate([head, tail], axis=-1)


if __name__ == "__main__":
    # conf = {'init_layer': 32, 'hidden_layer_1': 64, 'hidden_layer_2': 32,
    #         'output_layer': 6}
    init_layer, h1, h2, output_layer = 32, 64, 32, 6
    batch = 256

    key = jax.random.PRNGKey(0)
    k_x, k_p = jax.random.split(key)
    params = init_params(k_p, init_layer, h1, h2, output_layer)
    x = jax.random.normal(k_x, (batch, init_layer), jnp.float32)

    # Batched path (primary).
    out = jax.block_until_ready(sat_col_avoid_policy(x, params))
    ref = reference_forward(x, params)
    assert out.shape == (batch, output_layer)
    assert jnp.allclose(out, ref, atol=1e-4, rtol=1e-4)

    # Single-observation path (API compatibility with the PyTorch forward).
    out1 = jax.block_until_ready(sat_col_avoid_policy(x[0], params))
    ref1 = reference_forward(x[0], params)
    assert out1.shape == (output_layer,)
    assert jnp.allclose(out1, ref1, atol=1e-4, rtol=1e-4)

    print("KERNEL_OK")
</pallas_src>

<mosaic_0001>
module attributes {stable_mosaic.version = 11 : i64} {
  func.func @kernel(%arg0: i32, %arg1: memref<128x32xf32, #tpu.memory_space<vmem>>, %arg2: memref<8x128xf32, #tpu.memory_space<vmem>>, %arg3: memref<288x128xf32, #tpu.memory_space<vmem>>, %arg4: memref<128x128xf32, #tpu.memory_space<vmem>>) attributes {dimension_semantics = [#tpu.dimension_semantics<parallel>], iteration_bounds = array<i64: 2>, scalar_prefetch = 0 : i64, scratch_operands = 0 : i64, tpu.core_type = #tpu.core_type<tc>, window_params = [{transform_indices = @transform_0, window_bounds = array<i64: 128, 32>}, {pipeline_mode = #tpu.pipeline_mode<synchronous>, transform_indices = @transform_1, window_bounds = array<i64: 8, 128>}, {pipeline_mode = #tpu.pipeline_mode<synchronous>, transform_indices = @transform_2, window_bounds = array<i64: 288, 128>}, {transform_indices = @transform_3, window_bounds = array<i64: 128, 128>}]} {
    %c0 = arith.constant 0 : index
    %c0_0 = arith.constant 0 : index
    %0 = vector.load %arg1[%c0, %c0_0] : memref<128x32xf32, #tpu.memory_space<vmem>>, vector<128x32xf32>
    %cst = arith.constant dense<0.000000e+00> : vector<128xf32>
    %1 = vector.multi_reduction <add>, %0, %cst [1] : vector<128x32xf32> to vector<128xf32>
    %2 = vector.shape_cast %1 : vector<128xf32> to vector<128x1xf32>
    %cst_1 = arith.constant 3.200000e+01 : f32
    %3 = vector.broadcast %cst_1 : f32 to vector<128x1xf32>
    %4 = arith.divf %2, %3 : vector<128x1xf32>
    %5 = vector.broadcast %4 : vector<128x1xf32> to vector<128x32xf32>
    %6 = arith.subf %0, %5 : vector<128x32xf32>
    %7 = arith.mulf %6, %6 : vector<128x32xf32>
    %cst_2 = arith.constant dense<0.000000e+00> : vector<128xf32>
    %8 = vector.multi_reduction <add>, %7, %cst_2 [1] : vector<128x32xf32> to vector<128xf32>
    %9 = vector.shape_cast %8 : vector<128xf32> to vector<128x1xf32>
    %cst_3 = arith.constant 3.200000e+01 : f32
    %10 = vector.broadcast %cst_3 : f32 to vector<128x1xf32>
    %11 = arith.divf %9, %10 : vector<128x1xf32>
    %cst_4 = arith.constant 9.99999974E-6 : f32
    %12 = vector.broadcast %cst_4 : f32 to vector<128x1xf32>
    %13 = arith.addf %11, %12 : vector<128x1xf32>
    %14 = math.rsqrt %13 : vector<128x1xf32>
    %15 = vector.broadcast %14 : vector<128x1xf32> to vector<128x32xf32>
    %16 = arith.mulf %6, %15 : vector<128x32xf32>
    %c0_5 = arith.constant 0 : index
    %c0_6 = arith.constant 0 : index
    %17 = vector.load %arg2[%c0_5, %c0_6] : memref<8x128xf32, #tpu.memory_space<vmem>>, vector<1x32xf32>
    %18 = vector.broadcast %17 : vector<1x32xf32> to vector<128x32xf32>
    %19 = arith.mulf %16, %18 : vector<128x32xf32>
    %c1 = arith.constant 1 : index
    %c0_7 = arith.constant 0 : index
    %20 = vector.load %arg2[%c1, %c0_7] : memref<8x128xf32, #tpu.memory_space<vmem>>, vector<1x32xf32>
    %21 = vector.broadcast %20 : vector<1x32xf32> to vector<128x32xf32>
    %22 = arith.addf %19, %21 : vector<128x32xf32>
    %c0_8 = arith.constant 0 : index
    %c0_9 = arith.constant 0 : index
    %23 = vector.load %arg3[%c0_8, %c0_9] : memref<288x128xf32, #tpu.memory_space<vmem>>, vector<32x128xf32>
    %cst_10 = arith.constant dense<0.000000e+00> : vector<128x128xf32>
    %24 = tpu.matmul %22, %23, %cst_10 {dimension_numbers = #tpu.dot_dimension_numbers<[1], [0], [0], [1], [0, 0, 1, 1], [], []>} : vector<128x32xf32>, vector<32x128xf32>, vector<128x128xf32> -> vector<128x128xf32>
    %c2 = arith.constant 2 : index
    %c0_11 = arith.constant 0 : index
    %25 = vector.load %arg2[%c2, %c0_11] : memref<8x128xf32, #tpu.memory_space<vmem>>, vector<1x128xf32>
    %26 = vector.broadcast %25 : vector<1x128xf32> to vector<128x128xf32>
    %27 = arith.addf %24, %26 : vector<128x128xf32>
    %cst_12 = arith.constant 0.000000e+00 : f32
    %28 = vector.broadcast %cst_12 : f32 to vector<128x128xf32>
    %29 = arith.maximumf %27, %28 : vector<128x128xf32>
    %c32 = arith.constant 32 : index
    %c0_13 = arith.constant 0 : index
    %30 = vector.load %arg3[%c32, %c0_13] : memref<288x128xf32, #tpu.memory_space<vmem>>, vector<128x128xf32>
    %cst_14 = arith.constant dense<0.000000e+00> : vector<128x128xf32>
    %31 = tpu.matmul %29, %30, %cst_14 {dimension_numbers = #tpu.dot_dimension_numbers<[1], [0], [0], [1], [0, 0, 1, 1], [], []>} : vector<128x128xf32>, vector<128x128xf32>, vector<128x128xf32> -> vector<128x128xf32>
    %c3 = arith.constant 3 : index
    %c0_15 = arith.constant 0 : index
    %32 = vector.load %arg2[%c3, %c0_15] : memref<8x128xf32, #tpu.memory_space<vmem>>, vector<1x128xf32>
    %33 = vector.broadcast %32 : vector<1x128xf32> to vector<128x128xf32>
    %34 = arith.addf %31, %33 : vector<128x128xf32>
    %cst_16 = arith.constant 0.000000e+00 : f32
    %35 = vector.broadcast %cst_16 : f32 to vector<128x128xf32>
    %36 = arith.maximumf %34, %35 : vector<128x128xf32>
    %c160 = arith.constant 160 : index
    %c0_17 = arith.constant 0 : index
    %37 = vector.load %arg3[%c160, %c0_17] : memref<288x128xf32, #tpu.memory_space<vmem>>, vector<128x128xf32>
    %cst_18 = arith.constant dense<0.000000e+00> : vector<128x128xf32>
    %38 = tpu.matmul %36, %37, %cst_18 {dimension_numbers = #tpu.dot_dimension_numbers<[1], [0], [0], [1], [0, 0, 1, 1], [], []>} : vector<128x128xf32>, vector<128x128xf32>, vector<128x128xf32> -> vector<128x128xf32>
    %c4 = arith.constant 4 : index
    %c0_19 = arith.constant 0 : index
    %39 = vector.load %arg2[%c4, %c0_19] : memref<8x128xf32, #tpu.memory_space<vmem>>, vector<1x128xf32>
    %40 = vector.broadcast %39 : vector<1x128xf32> to vector<128x128xf32>
    %41 = arith.addf %38, %40 : vector<128x128xf32>
    %c5 = arith.constant 5 : index
    %c0_20 = arith.constant 0 : index
    %42 = vector.load %arg2[%c5, %c0_20] : memref<8x128xf32, #tpu.memory_space<vmem>>, vector<1x128xf32>
    %cst_21 = arith.constant 5.000000e-01 : f32
    %43 = vector.broadcast %cst_21 : f32 to vector<1x128xf32>
    %44 = arith.cmpf ogt, %42, %43 : vector<1x128xf32>
    %45 = math.tanh %41 : vector<128x128xf32>
    %cst_22 = arith.constant 0.000000e+00 : f32
    %46 = vector.broadcast %cst_22 : f32 to vector<128x128xf32>
    %47 = arith.maximumf %41, %46 : vector<128x128xf32>
    %cst_23 = arith.constant 9.99999974E-6 : f32
    %48 = vector.broadcast %cst_23 : f32 to vector<128x128xf32>
    %49 = arith.addf %47, %48 : vector<128x128xf32>
    %50 = vector.shape_cast %44 : vector<1x128xi1> to vector<1x128xi1>
    %51 = vector.broadcast %50 : vector<1x128xi1> to vector<128x128xi1>
    %52 = arith.select %51, %45, %49 : vector<128x128xi1>, vector<128x128xf32>
    %c0_24 = arith.constant 0 : index
    %c0_25 = arith.constant 0 : index
    %53 = vector.load %arg4[%c0_24, %c0_25] : memref<128x128xf32, #tpu.memory_space<vmem>>, vector<128x128xf32>
    tpu.vector_store %arg4[%c0_24, %c0_25], %52 {strides = array<i32>} : memref<128x128xf32, #tpu.memory_space<vmem>>, vector<128x128xf32>,
    return
  }
  func.func @transform_0(%arg0: i32) -> (i32, i32) {
    %c0_i32 = arith.constant 0 : i32
    %c0_i32_0 = arith.constant 0 : i32
    return %arg0, %c0_i32 : i32, i32
  }
  func.func @transform_1(%arg0: i32) -> (i32, i32) {
    %c0_i32 = arith.constant 0 : i32
    %c0_i32_0 = arith.constant 0 : i32
    %c0_i32_1 = arith.constant 0 : i32
    return %c0_i32, %c0_i32_0 : i32, i32
  }
  func.func @transform_2(%arg0: i32) -> (i32, i32) {
    %c0_i32 = arith.constant 0 : i32
    %c0_i32_0 = arith.constant 0 : i32
    %c0_i32_1 = arith.constant 0 : i32
    return %c0_i32, %c0_i32_0 : i32, i32
  }
  func.func @transform_3(%arg0: i32) -> (i32, i32) {
    %c0_i32 = arith.constant 0 : i32
    %c0_i32_0 = arith.constant 0 : i32
    return %arg0, %c0_i32 : i32, i32
  }
}

</mosaic_0001>

<llo_original>
// kernel: tpu_custom_call.1
$region0: #{tpu_custom_call.1}
  #allocation0 [shape = 'u32[]', space=smem, size = 0x4, offset = 0x4, fixed_abs, tag = 'smem constant byte address 0x4 - core index']
  #allocation1 [shape = 'u32[144,128]{1,0:T(1,128)}', space=vmem, size = 0x12000, scoped, tag = 'internal scratch']
  %s0 = inlined_call_operand.vmem [shape: f32[256,32], index: 0, kind: input, shape index: {}]
  %s1 = inlined_call_operand.vmem [shape: f32[8,128], index: 1, kind: input, shape index: {}]
  %s2 = inlined_call_operand.vmem [shape: f32[288,128], index: 2, kind: input, shape index: {}]
  %s3 = inlined_call_operand.hbm [shape: f32[256,128], index: 3, kind: output, shape index: {}]
  %s4 = sld [smem:[#allocation0]]
  $region45: #{tpu_custom_call.1} parent=0
    _
  %s6 = ssub.s32 1, %s4
  %s7 = scalar_select 0, %s6, %s4
  $region1: #{tpu_custom_call.1} parent=0
    #allocation2 [shape = 'u8[131072]{0}', space=vmem, size = 0x20000, scoped, tag = 'output window, operand 0']
    #allocation3 [shape = 's32[2]{0}', space=sflag, size = 0x8, scoped, tag = 'scoped memory for tpu_custom_call.1']
    %8 = vsyncpa [#allocation3], 0
    %s9 = scalar_lea.sflag [#allocation3], 1
    %10 = vsyncpa %s9, 0
    loop: start=0, step=1, limit=4
    $region2: #{tpu_custom_call.1} parent=1 // loop_pre_header
      _
    $region3: #{tpu_custom_call.1} parent=1 // loop_header
      %s12 = sphi 0, %s16
      %p13 = scmp.ge.s32.totalorder %s12, 4
      %s22 = sphi 0, %s24
      %s25 = sphi 0, %s22
      %s26 = sphi 0, %s25
      %s42 = sphi 0, %s26
      %s46 = sphi 0, %s46
      %s48 = sphi 0, %s46
      %s49 = sphi 0, %s48
      %s63 = sphi 0, %s49
      %s67 = sphi 0, %s67
      %s69 = sphi 0, %s67
      %s70 = sphi 0, %s69
      %s84 = sphi 0, %s70
      %s90 = sphi 0, %s92
      %s93 = sphi 0, %s90
      %s94 = sphi 0, %s93
      %s110 = sphi 0, %s94
    $region4: #{tpu_custom_call.1} parent=1 // loop_header_branch
      %15 = sbr.rel (%p13) target = $region8
    $region5: #{tpu_custom_call.1} parent=1 // loop_body
      %s17 = ssub.s32 %s12, 1
      %s18 = ssub.s32 %s12, 2
      %s19 = sadd.s32 %s12, 1
      %s20 = ssub.s32 %s12, %s19
      %p21 = scmp.eq.s32.totalorder %s20, 0
      %s23 = sadd.s32 %s22, 1
      %s24 = scalar_select %p21, %s22, %s23
      %p27 = pneg %p21
      %p28 = scmp.eq.s32.totalorder %s12, 1
      %p29 = por %p27, %p28
      %p30 = scmp.ne.s32.totalorder %s22, %s25
      %p31 = scmp.eq.s32.totalorder %s12, 0
      %p32 = por %p30, %p31
      %p33 = scmp.ne.s32.totalorder %s22, %s25
      %p34 = scmp.eq.s32.totalorder %s17, 1
      %p35 = por %p33, %p34
      %p36 = scmp.ne.s32.totalorder %s25, %s26
      %p37 = scmp.eq.s32.totalorder %s17, 0
      %p38 = por %p36, %p37
      %p39 = scmp.ne.s32.totalorder %s25, %s26
      %p40 = scmp.eq.s32.totalorder %s18, 1
      %p41 = por %p39, %p40
      %p43 = scmp.ne.s32.totalorder %s26, %s42
      %p44 = scmp.eq.s32.totalorder %s18, 0
      %p45 = por %p43, %p44
      %s47 = sadd.s32 %s46, 1
      %p50 = scmp.eq.s32.totalorder %s12, 1
      %p51 = scmp.ne.s32.totalorder %s46, %s48
      %p52 = scmp.eq.s32.totalorder %s12, 0
      %p53 = por %p51, %p52
      %p54 = scmp.ne.s32.totalorder %s46, %s48
      %p55 = scmp.eq.s32.totalorder %s17, 1
      %p56 = por %p54, %p55
      %p57 = scmp.ne.s32.totalorder %s48, %s49
      %p58 = scmp.eq.s32.totalorder %s17, 0
      %p59 = por %p57, %p58
      %p60 = scmp.ne.s32.totalorder %s48, %s49
      %p61 = scmp.eq.s32.totalorder %s18, 1
      %p62 = por %p60, %p61
      %p64 = scmp.ne.s32.totalorder %s49, %s63
      %p65 = scmp.eq.s32.totalorder %s18, 0
      %p66 = por %p64, %p65
      %s68 = sadd.s32 %s67, 1
      %p71 = scmp.eq.s32.totalorder %s12, 1
      %p72 = scmp.ne.s32.totalorder %s67, %s69
      %p73 = scmp.eq.s32.totalorder %s12, 0
      %p74 = por %p72, %p73
      %p75 = scmp.ne.s32.totalorder %s67, %s69
      %p76 = scmp.eq.s32.totalorder %s17, 1
      %p77 = por %p75, %p76
      %p78 = scmp.ne.s32.totalorder %s69, %s70
      %p79 = scmp.eq.s32.totalorder %s17, 0
      %p80 = por %p78, %p79
      %p81 = scmp.ne.s32.totalorder %s69, %s70
      %p82 = scmp.eq.s32.totalorder %s18, 1
      %p83 = por %p81, %p82
      %p85 = scmp.ne.s32.totalorder %s70, %s84
      %p86 = scmp.eq.s32.totalorder %s18, 0
      %p87 = por %p85, %p86
      %s88 = ssub.s32 %s12, %s19
      %p89 = scmp.eq.s32.totalorder %s88, 0
      %s91 = sadd.s32 %s90, 1
      %s92 = scalar_select %p89, %s90, %s91
      %p95 = pneg %p89
      %p96 = scmp.eq.s32.totalorder %s12, 1
      %p97 = por %p95, %p96
      %p98 = scmp.ne.s32.totalorder %s90, %s93
      %p99 = scmp.eq.s32.totalorder %s12, 0
      %p100 = por %p98, %p99
      %p101 = scmp.ne.s32.totalorder %s90, %s93
      %p102 = scmp.eq.s32.totalorder %s17, 1
      %p103 = por %p101, %p102
      %p104 = scmp.ne.s32.totalorder %s93, %s94
      %p105 = scmp.eq.s32.totalorder %s17, 0
      %p106 = por %p104, %p105
      %p107 = scmp.ne.s32.totalorder %s93, %s94
      %p108 = scmp.eq.s32.totalorder %s18, 1
      %p109 = por %p107, %p108
      %p111 = scmp.ne.s32.totalorder %s94, %s110
      %p112 = scmp.eq.s32.totalorder %s18, 0
      %p113 = por %p111, %p112
      %p114 = scmp.le.s32.totalorder 1, %s12
      %p115 = scmp.lt.s32.totalorder %s12, 3
      %p116 = pnand %p114, %p115
      %p117 = pneg %p116
      // Predicated region
      $region9: #{tpu_custom_call.1} parent=5 // pred_check
        _
      $region10: #{tpu_custom_call.1} parent=5 // pred_check_branch
        %119 = sbr.rel (%p116) target = $region12
      $region11: #{tpu_custom_call.1} parent=5 // pred_region
        %s120 = ssub.s32 %s12, 1
        // Predicated region
        $region13: #{tpu_custom_call.1} parent=11 // pred_check
          %p121 = pneg %p59
        $region14: #{tpu_custom_call.1} parent=11 // pred_check_branch
          %123 = sbr.rel (%p121) target = $region16
        $region15: #{tpu_custom_call.1} parent=11 // pred_region
          _
        $region16: #{tpu_custom_call.1} parent=11 // pred_fallthru
          _
        // Predicated region
        $region17: #{tpu_custom_call.1} parent=11 // pred_check
          %p124 = pneg %p80
        $region18: #{tpu_custom_call.1} parent=11 // pred_check_branch
          %126 = sbr.rel (%p124) target = $region20
        $region19: #{tpu_custom_call.1} parent=11 // pred_region
          _
        $region20: #{tpu_custom_call.1} parent=11 // pred_fallthru
          _
      $region12: #{tpu_custom_call.1} parent=5 // pred_fallthru
        _
      %p127 = scmp.lt.s32.totalorder %s12, 2
      // Predicated region
      $region21: #{tpu_custom_call.1} parent=5 // pred_check
        %p128 = pneg %p127
      $region22: #{tpu_custom_call.1} parent=5 // pred_check_branch
        %130 = sbr.rel (%p128) target = $region24
      $region23: #{tpu_custom_call.1} parent=5 // pred_region
        // Predicated region
        $region25: #{tpu_custom_call.1} parent=23 // pred_check
          %p131 = pneg %p32
        $region26: #{tpu_custom_call.1} parent=23 // pred_check_branch
          %133 = sbr.rel (%p131) target = $region28
        $region27: #{tpu_custom_call.1} parent=23 // pred_region
          %s134 = smul.u32 16, %s12
          %p135 = scmp.lt.s32.totalorder %s134, 31
          %s136 = scalar_select %p135, %s134, 31
          %s137 = smul.addr %s136, 8
          %s138 = scalar_lea.vmem %s0, %s137
          %s139 = smul.u32 16, %s12
        $region28: #{tpu_custom_call.1} parent=23 // pred_fallthru
          _
      $region24: #{tpu_custom_call.1} parent=5 // pred_fallthru
        _
      %p140 = scmp.le.s32.totalorder 1, %s12
      %p141 = scmp.lt.s32.totalorder %s12, 3
      %p142 = pnand %p140, %p141
      %p143 = pneg %p142
      // Predicated region
      $region29: #{tpu_custom_call.1} parent=5 // pred_check
        _
      $region30: #{tpu_custom_call.1} parent=5 // pred_check_branch
        %145 = sbr.rel (%p142) target = $region32
      $region31: #{tpu_custom_call.1} parent=5 // pred_region
        %s146 = ssub.s32 %s12, 1
        %s147 = smul.u32 16, %s17
        %p148 = scmp.lt.s32.totalorder %s147, 31
        %s149 = scalar_select %p148, %s147, 31
        %s150 = smul.addr %s149, 8
        %s151 = scalar_lea.vmem %s0, %s150
        %p152 = pneg %p38
        %p153 = pneg %p35
        %p154 = pneg %p59
        %p155 = pneg %p56
        %p156 = pneg %p80
        %p157 = pneg %p77
        %p158 = pneg %p106
        %p159 = pneg %p103
        %s160 = sand.u32 %s93, 1
        %s161 = scalar_lea.sflag [#allocation3], %s160
        %s162 = sand.u32 %s93, 1
        %s163 = smul.addr %s162, 128
        %s164 = scalar_lea.vmem [#allocation2], %s163
        %s165 = smul.u32 16, %s17
        %p166 = scmp.lt.s32.totalorder %s165, 31
        %s167 = scalar_select %p166, %s165, 31
        %s168 = smul.addr %s167, 8
        %s169 = scalar_lea.vmem %s0, %s168
        %s170 = smul.u32 16, %s17
        %s171 = smul.u32 16, %s17
        %v172 = vld [vmem:[%s169] sm:$0xff]
        %v173 = vld [vmem:[%s169 + $0x8] sm:$0xff]
        %v174 = vld [vmem:[%s169 + $0x10] sm:$0xff]
        %v175 = vld [vmem:[%s169 + $0x18] sm:$0xff]
        %v176 = vld [vmem:[%s169 + $0x20] sm:$0xff]
        %v177 = vld [vmem:[%s169 + $0x28] sm:$0xff]
        %v178 = vld [vmem:[%s169 + $0x30] sm:$0xff]
        %v179 = vld [vmem:[%s169 + $0x38] sm:$0xff]
        %v180 = vld [vmem:[%s169 + $0x40] sm:$0xff]
        %v181 = vld [vmem:[%s169 + $0x48] sm:$0xff]
        %v182 = vld [vmem:[%s169 + $0x50] sm:$0xff]
        %v183 = vld [vmem:[%s169 + $0x58] sm:$0xff]
        %v184 = vld [vmem:[%s169 + $0x60] sm:$0xff]
        %v185 = vld [vmem:[%s169 + $0x68] sm:$0xff]
        %v186 = vld [vmem:[%s169 + $0x70] sm:$0xff]
        %v187 = vld [vmem:[%s169 + $0x78] sm:$0xff]
        %vm188 = vcmask 261120
        %v189 = vsel %vm188, %v172, 0.0
        %190 = vadd.xlane.f32.xlu0 %v189
        %v191 = vpop.xlane.xlu0 %190
        %v192 = vsel %vm188, %v173, 0.0
        %193 = vadd.xlane.f32.xlu0 %v192
        %v194 = vpop.xlane.xlu0 %193
        %v195 = vsel %vm188, %v174, 0.0
        %196 = vadd.xlane.f32.xlu0 %v195
        %v197 = vpop.xlane.xlu0 %196
        %v198 = vsel %vm188, %v175, 0.0
        %199 = vadd.xlane.f32.xlu0 %v198
        %v200 = vpop.xlane.xlu0 %199
        %v201 = vsel %vm188, %v176, 0.0
        %202 = vadd.xlane.f32.xlu0 %v201
        %v203 = vpop.xlane.xlu0 %202
        %v204 = vsel %vm188, %v177, 0.0
        %205 = vadd.xlane.f32.xlu0 %v204
        %v206 = vpop.xlane.xlu0 %205
        %v207 = vsel %vm188, %v178, 0.0
        %208 = vadd.xlane.f32.xlu0 %v207
        %v209 = vpop.xlane.xlu0 %208
        %v210 = vsel %vm188, %v179, 0.0
        %211 = vadd.xlane.f32.xlu0 %v210
        %v212 = vpop.xlane.xlu0 %211
        %v213 = vsel %vm188, %v180, 0.0
        %214 = vadd.xlane.f32.xlu0 %v213
        %v215 = vpop.xlane.xlu0 %214
        %v216 = vsel %vm188, %v181, 0.0
        %217 = vadd.xlane.f32.xlu0 %v216
        %v218 = vpop.xlane.xlu0 %217
        %v219 = vsel %vm188, %v182, 0.0
        %220 = vadd.xlane.f32.xlu0 %v219
        %v221 = vpop.xlane.xlu0 %220
        %v222 = vsel %vm188, %v183, 0.0
        %223 = vadd.xlane.f32.xlu0 %v222
        %v224 = vpop.xlane.xlu0 %223
        %v225 = vsel %vm188, %v184, 0.0
        %226 = vadd.xlane.f32.xlu0 %v225
        %v227 = vpop.xlane.xlu0 %226
        %v228 = vsel %vm188, %v185, 0.0
        %229 = vadd.xlane.f32.xlu0 %v228
        %v230 = vpop.xlane.xlu0 %229
        %v231 = vsel %vm188, %v186, 0.0
        %232 = vadd.xlane.f32.xlu0 %v231
        %v233 = vpop.xlane.xlu0 %232
        %v234 = vsel %vm188, %v187, 0.0
        %235 = vadd.xlane.f32.xlu0 %v234
        %v236 = vpop.xlane.xlu0 %235
        %v237 = vrcp.pop 32.0
        %v238 = vmul.f32 %v191, %v237
        %v239 = vmul.f32 %v194, %v237
        %v240 = vmul.f32 %v197, %v237
        %v241 = vmul.f32 %v200, %v237
        %v242 = vmul.f32 %v203, %v237
        %v243 = vmul.f32 %v206, %v237
        %v244 = vmul.f32 %v209, %v237
        %v245 = vmul.f32 %v212, %v237
        %v246 = vmul.f32 %v215, %v237
        %v247 = vmul.f32 %v218, %v237
        %v248 = vmul.f32 %v221, %v237
        %v249 = vmul.f32 %v224, %v237
        %v250 = vmul.f32 %v227, %v237
        %v251 = vmul.f32 %v230, %v237
        %v252 = vmul.f32 %v233, %v237
        %v253 = vmul.f32 %v236, %v237
        %v254 = vsub.f32 %v172, %v238
        %v255 = vsub.f32 %v173, %v239
        %v256 = vsub.f32 %v174, %v240
        %v257 = vsub.f32 %v175, %v241
        %v258 = vsub.f32 %v176, %v242
        %v259 = vsub.f32 %v177, %v243
        %v260 = vsub.f32 %v178, %v244
        %v261 = vsub.f32 %v179, %v245
        %v262 = vsub.f32 %v180, %v246
        %v263 = vsub.f32 %v181, %v247
        %v264 = vsub.f32 %v182, %v248
        %v265 = vsub.f32 %v183, %v249
        %v266 = vsub.f32 %v184, %v250
        %v267 = vsub.f32 %v185, %v251
        %v268 = vsub.f32 %v186, %v252
        %v269 = vsub.f32 %v187, %v253
        %v270 = vmul.f32 %v254, %v254
        %v271 = vmul.f32 %v255, %v255
        %v272 = vmul.f32 %v256, %v256
        %v273 = vmul.f32 %v257, %v257
        %v274 = vmul.f32 %v258, %v258
        %v275 = vmul.f32 %v259, %v259
        %v276 = vmul.f32 %v260, %v260
        %v277 = vmul.f32 %v261, %v261
        %v278 = vmul.f32 %v262, %v262
        %v279 = vmul.f32 %v263, %v263
        %v280 = vmul.f32 %v264, %v264
        %v281 = vmul.f32 %v265, %v265
        %v282 = vmul.f32 %v266, %v266
        %v283 = vmul.f32 %v267, %v267
        %v284 = vmul.f32 %v268, %v268
        %v285 = vmul.f32 %v269, %v269
        %v286 = vsel %vm188, %v270, 0.0
        %287 = vadd.xlane.f32.xlu0 %v286
        %v288 = vpop.xlane.xlu0 %287
        %v289 = vsel %vm188, %v271, 0.0
        %290 = vadd.xlane.f32.xlu0 %v289
        %v291 = vpop.xlane.xlu0 %290
        %v292 = vsel %vm188, %v272, 0.0
        %293 = vadd.xlane.f32.xlu0 %v292
        %v294 = vpop.xlane.xlu0 %293
        %v295 = vsel %vm188, %v273, 0.0
        %296 = vadd.xlane.f32.xlu0 %v295
        %v297 = vpop.xlane.xlu0 %296
        %v298 = vsel %vm188, %v274, 0.0
        %299 = vadd.xlane.f32.xlu0 %v298
        %v300 = vpop.xlane.xlu0 %299
        %v301 = vsel %vm188, %v275, 0.0
        %302 = vadd.xlane.f32.xlu0 %v301
        %v303 = vpop.xlane.xlu0 %302
        %v304 = vsel %vm188, %v276, 0.0
        %305 = vadd.xlane.f32.xlu0 %v304
        %v306 = vpop.xlane.xlu0 %305
        %v307 = vsel %vm188, %v277, 0.0
        %308 = vadd.xlane.f32.xlu0 %v307
        %v309 = vpop.xlane.xlu0 %308
        %v310 = vsel %vm188, %v278, 0.0
        %311 = vadd.xlane.f32.xlu0 %v310
        %v312 = vpop.xlane.xlu0 %311
        %v313 = vsel %vm188, %v279, 0.0
        %314 = vadd.xlane.f32.xlu0 %v313
        %v315 = vpop.xlane.xlu0 %314
        %v316 = vsel %vm188, %v280, 0.0
        %317 = vadd.xlane.f32.xlu0 %v316
        %v318 = vpop.xlane.xlu0 %317
        %v319 = vsel %vm188, %v281, 0.0
        %320 = vadd.xlane.f32.xlu0 %v319
        %v321 = vpop.xlane.xlu0 %320
        %v322 = vsel %vm188, %v282, 0.0
        %323 = vadd.xlane.f32.xlu0 %v322
        %v324 = vpop.xlane.xlu0 %323
        %v325 = vsel %vm188, %v283, 0.0
        %326 = vadd.xlane.f32.xlu0 %v325
        %v327 = vpop.xlane.xlu0 %326
        %v328 = vsel %vm188, %v284, 0.0
        %329 = vadd.xlane.f32.xlu0 %v328
        %v330 = vpop.xlane.xlu0 %329
        %v331 = vsel %vm188, %v285, 0.0
        %332 = vadd.xlane.f32.xlu0 %v331
        %v333 = vpop.xlane.xlu0 %332
        %v334 = vmul.f32 %v288, %v237
        %v335 = vmul.f32 %v291, %v237
        %v336 = vmul.f32 %v294, %v237
        %v337 = vmul.f32 %v297, %v237
        %v338 = vmul.f32 %v300, %v237
        %v339 = vmul.f32 %v303, %v237
        %v340 = vmul.f32 %v306, %v237
        %v341 = vmul.f32 %v309, %v237
        %v342 = vmul.f32 %v312, %v237
        %v343 = vmul.f32 %v315, %v237
        %v344 = vmul.f32 %v318, %v237
        %v345 = vmul.f32 %v321, %v237
        %v346 = vmul.f32 %v324, %v237
        %v347 = vmul.f32 %v327, %v237
        %v348 = vmul.f32 %v330, %v237
        %v349 = vmul.f32 %v333, %v237
        %v350 = vadd.f32 %v334, 1e-05
        %v351 = vadd.f32 %v335, 1e-05
        %v352 = vadd.f32 %v336, 1e-05
        %v353 = vadd.f32 %v337, 1e-05
        %v354 = vadd.f32 %v338, 1e-05
        %v355 = vadd.f32 %v339, 1e-05
        %v356 = vadd.f32 %v340, 1e-05
        %v357 = vadd.f32 %v341, 1e-05
        %v358 = vadd.f32 %v342, 1e-05
        %v359 = vadd.f32 %v343, 1e-05
        %v360 = vadd.f32 %v344, 1e-05
        %v361 = vadd.f32 %v345, 1e-05
        %v362 = vadd.f32 %v346, 1e-05
        %v363 = vadd.f32 %v347, 1e-05
        %v364 = vadd.f32 %v348, 1e-05
        %v365 = vadd.f32 %v349, 1e-05
        %v366 = vrsqrt.pop %v350
        %v367 = vrsqrt.pop %v351
        %v368 = vrsqrt.pop %v352
        %v369 = vrsqrt.pop %v353
        %v370 = vrsqrt.pop %v354
        %v371 = vrsqrt.pop %v355
        %v372 = vrsqrt.pop %v356
        %v373 = vrsqrt.pop %v357
        %v374 = vrsqrt.pop %v358
        %v375 = vrsqrt.pop %v359
        %v376 = vrsqrt.pop %v360
        %v377 = vrsqrt.pop %v361
        %v378 = vrsqrt.pop %v362
        %v379 = vrsqrt.pop %v363
        %v380 = vrsqrt.pop %v364
        %v381 = vrsqrt.pop %v365
        %v382 = vmul.f32 %v254, %v366
        %v383 = vmul.f32 %v255, %v367
        %v384 = vmul.f32 %v256, %v368
        %v385 = vmul.f32 %v257, %v369
        %v386 = vmul.f32 %v258, %v370
        %v387 = vmul.f32 %v259, %v371
        %v388 = vmul.f32 %v260, %v372
        %v389 = vmul.f32 %v261, %v373
        %v390 = vmul.f32 %v262, %v374
        %v391 = vmul.f32 %v263, %v375
        %v392 = vmul.f32 %v264, %v376
        %v393 = vmul.f32 %v265, %v377
        %v394 = vmul.f32 %v266, %v378
        %v395 = vmul.f32 %v267, %v379
        %v396 = vmul.f32 %v268, %v380
        %v397 = vmul.f32 %v269, %v381
        %v398 = vld [vmem:[%s1] sm:$0x1]
        %v399 = vlaneseq
        %v400 = vshrl.u32 %v399, 7
        %v401 = vsub.s32 0, %v400
        %v402 = vrot.slane %v398, %v401
        %v403 = vmul.f32 %v382, %v402
        %v404 = vmul.f32 %v383, %v402
        %v405 = vmul.f32 %v384, %v402
        %v406 = vmul.f32 %v385, %v402
        %v407 = vmul.f32 %v386, %v402
        %v408 = vmul.f32 %v387, %v402
        %v409 = vmul.f32 %v388, %v402
        %v410 = vmul.f32 %v389, %v402
        %v411 = vmul.f32 %v390, %v402
        %v412 = vmul.f32 %v391, %v402
        %v413 = vmul.f32 %v392, %v402
        %v414 = vmul.f32 %v393, %v402
        %v415 = vmul.f32 %v394, %v402
        %v416 = vmul.f32 %v395, %v402
        %v417 = vmul.f32 %v396, %v402
        %v418 = vmul.f32 %v397, %v402
        %v419 = vld [vmem:[%s1 + $0x1] sm:$0x1]
        %v420 = vlaneseq
        %v421 = vshrl.u32 %v420, 7
        %v422 = vsub.s32 0, %v421
        %v423 = vrot.slane %v419, %v422
        %v424 = vadd.f32 %v403, %v423
        %v425 = vadd.f32 %v404, %v423
        %v426 = vadd.f32 %v405, %v423
        %v427 = vadd.f32 %v406, %v423
        %v428 = vadd.f32 %v407, %v423
        %v429 = vadd.f32 %v408, %v423
        %v430 = vadd.f32 %v409, %v423
        %v431 = vadd.f32 %v410, %v423
        %v432 = vadd.f32 %v411, %v423
        %v433 = vadd.f32 %v412, %v423
        %v434 = vadd.f32 %v413, %v423
        %v435 = vadd.f32 %v414, %v423
        %v436 = vadd.f32 %v415, %v423
        %v437 = vadd.f32 %v416, %v423
        %v438 = vadd.f32 %v417, %v423
        %v439 = vadd.f32 %v418, %v423
        %v440 = vld [vmem:[%s2] sm:$0xff]
        %v441 = vld [vmem:[%s2 + $0x8] sm:$0xff]
        %v442 = vld [vmem:[%s2 + $0x10] sm:$0xff]
        %v443 = vld [vmem:[%s2 + $0x18] sm:$0xff]
        %v444 = vld [vmem:[%s1 + $0x2] sm:$0x1]
        %v445 = vlaneseq
        %v446 = vshrl.u32 %v445, 7
        %v447 = vsub.s32 0, %v446
        %v448 = vrot.slane %v444, %v447
        %v450 = vsel %vm188, %v424, 0
        %v453 = vsel %vm188, %v425, 0
        %v456 = vsel %vm188, %v426, 0
        %v459 = vsel %vm188, %v427, 0
        %v462 = vsel %vm188, %v428, 0
        %v465 = vsel %vm188, %v429, 0
        %v468 = vsel %vm188, %v430, 0
        %v471 = vsel %vm188, %v431, 0
        %v474 = vsel %vm188, %v432, 0
        %v477 = vsel %vm188, %v433, 0
        %v480 = vsel %vm188, %v434, 0
        %v483 = vsel %vm188, %v435, 0
        %v486 = vsel %vm188, %v436, 0
        %v489 = vsel %vm188, %v437, 0
        %v492 = vsel %vm188, %v438, 0
        %v495 = vsel %vm188, %v439, 0
        %497 = vmatprep.subr.mxu0 0.0
        %498 = vmatpush1.msra.mxu0 %v440
        %499 = vmatprep.subr.mxu0 0.0
        %500 = vmatpush1.msra.mxu0 %v441
        %501 = vmatprep.subr.mxu0 0.0
        %502 = vmatpush1.msra.mxu0 %v442
        %503 = vmatprep.subr.mxu0 0.0
        %504 = vmatpush1.msra.mxu0 %v443
        %505 = vmatprep.subr.mxu0 0.0
        %506 = vmatpush1.msra.mxu0 0.0
        %507 = vmatprep.subr.mxu0 0.0
        %508 = vmatpush1.msra.mxu0 0.0
        %509 = vmatprep.subr.mxu0 0.0
        %510 = vmatpush1.msra.mxu0 0.0
        %511 = vmatprep.subr.mxu0 0.0
        %512 = vmatpush1.msra.mxu0 0.0
        %513 = vmatprep.subr.mxu0 0.0
        %514 = vmatpush1.msra.mxu0 0.0
        %515 = vmatprep.subr.mxu0 0.0
        %516 = vmatpush1.msra.mxu0 0.0
        %517 = vmatprep.subr.mxu0 0.0
        %518 = vmatpush1.msra.mxu0 0.0
        %519 = vmatprep.subr.mxu0 0.0
        %520 = vmatpush1.msra.mxu0 0.0
        %521 = vmatprep.subr.mxu0 0.0
        %522 = vmatpush1.msra.mxu0 0.0
        %523 = vmatprep.subr.mxu0 0.0
        %524 = vmatpush1.msra.mxu0 0.0
        %525 = vmatprep.subr.mxu0 0.0
        %526 = vmatpush1.msra.mxu0 0.0
        %527 = vmatprep.subr.mxu0 0.0
        %528 = vmatpush1.msra.mxu0 0.0
        %529 = vmatprep.subr.mxu0 0.0
        %530 = vmatpush1.msra.mxu0 0.0
        %531 = vmatprep.subr.mxu0 0.0
        %532 = vmatpush1.msra.mxu0 0.0
        %533 = vmatprep.subr.mxu0 0.0
        %534 = vmatpush1.msra.mxu0 0.0
        %535 = vmatprep.subr.mxu0 0.0
        %536 = vmatpush1.msra.mxu0 0.0
        %537 = vmatprep.subr.mxu0 0.0
        %538 = vmatpush1.msra.mxu0 0.0
        %539 = vmatprep.subr.mxu0 0.0
        %540 = vmatpush1.msra.mxu0 0.0
        %541 = vmatprep.subr.mxu0 0.0
        %542 = vmatpush1.msra.mxu0 0.0
        %543 = vmatprep.subr.mxu0 0.0
        %544 = vmatpush1.msra.mxu0 0.0
        %545 = vmatprep.subr.mxu0 0.0
        %546 = vmatpush1.msra.mxu0 0.0
        %547 = vmatprep.subr.mxu0 0.0
        %548 = vmatpush1.msra.mxu0 0.0
        %549 = vmatprep.subr.mxu0 0.0
        %550 = vmatpush1.msra.mxu0 0.0
        %551 = vmatprep.subr.mxu0 0.0
        %552 = vmatpush1.msra.mxu0 0.0
        %553 = vmatprep.subr.mxu0 0.0
        %554 = vmatpush1.msra.mxu0 0.0
        %555 = vmatprep.subr.mxu0 0.0
        %556 = vmatpush1.msra.mxu0 0.0
        %557 = vmatprep.subr.mxu0 0.0
        %558 = vmatpush1.msra.mxu0 0.0
        %559 = vmatprep.subr.mxu0 0.0
        %560 = vmatpush1.msra.mxu0 0.0
        %561 = vmatprep.mubr.f32.mxu0 0.0
        %562 = vmatmul.mubr.f32.gmra.mrb[0].mxu0 %v450
        %v563 = vpop.f32.mrb[0].mxu0
        %v564 = vadd.f32 %v448, %v563
        %v565 = vpop.f32.mrb[0].mxu0
        %566 = vmatprep.mubr.f32.mxu0 0.0
        %567 = vmatmul.mubr.f32.gmra.mrb[0].mxu0 %v453
        %v568 = vpop.f32.mrb[0].mxu0
        %v569 = vadd.f32 %v448, %v568
        %v570 = vpop.f32.mrb[0].mxu0
        %571 = vmatprep.mubr.f32.mxu0 0.0
        %572 = vmatmul.mubr.f32.gmra.mrb[0].mxu0 %v456
        %v573 = vpop.f32.mrb[0].mxu0
        %v574 = vadd.f32 %v448, %v573
        %v575 = vpop.f32.mrb[0].mxu0
        %576 = vmatprep.mubr.f32.mxu0 0.0
        %577 = vmatmul.mubr.f32.gmra.mrb[0].mxu0 %v459
        %v578 = vpop.f32.mrb[0].mxu0
        %v579 = vadd.f32 %v448, %v578
        %v580 = vpop.f32.mrb[0].mxu0
        %581 = vmatprep.mubr.f32.mxu0 0.0
        %582 = vmatmul.mubr.f32.gmra.mrb[0].mxu0 %v462
        %v583 = vpop.f32.mrb[0].mxu0
        %v584 = vadd.f32 %v448, %v583
        %v585 = vpop.f32.mrb[0].mxu0
        %586 = vmatprep.mubr.f32.mxu0 0.0
        %587 = vmatmul.mubr.f32.gmra.mrb[0].mxu0 %v465
        %v588 = vpop.f32.mrb[0].mxu0
        %v589 = vadd.f32 %v448, %v588
        %v590 = vpop.f32.mrb[0].mxu0
        %591 = vmatprep.mubr.f32.mxu0 0.0
        %592 = vmatmul.mubr.f32.gmra.mrb[0].mxu0 %v468
        %v593 = vpop.f32.mrb[0].mxu0
        %v594 = vadd.f32 %v448, %v593
        %v595 = vpop.f32.mrb[0].mxu0
        %596 = vmatprep.mubr.f32.mxu0 0.0
        %597 = vmatmul.mubr.f32.gmra.mrb[0].mxu0 %v471
        %v598 = vpop.f32.mrb[0].mxu0
        %v599 = vadd.f32 %v448, %v598
        %v600 = vpop.f32.mrb[0].mxu0
        %601 = vmatprep.mubr.f32.mxu0 0.0
        %602 = vmatmul.mubr.f32.gmra.mrb[0].mxu0 %v474
        %v603 = vpop.f32.mrb[0].mxu0
        %v604 = vadd.f32 %v448, %v603
        %v605 = vpop.f32.mrb[0].mxu0
        %606 = vmatprep.mubr.f32.mxu0 0.0
        %607 = vmatmul.mubr.f32.gmra.mrb[0].mxu0 %v477
        %v608 = vpop.f32.mrb[0].mxu0
        %v609 = vadd.f32 %v448, %v608
        %v610 = vpop.f32.mrb[0].mxu0
        %611 = vmatprep.mubr.f32.mxu0 0.0
        %612 = vmatmul.mubr.f32.gmra.mrb[0].mxu0 %v480
        %v613 = vpop.f32.mrb[0].mxu0
        %v614 = vadd.f32 %v448, %v613
        %v615 = vpop.f32.mrb[0].mxu0
        %616 = vmatprep.mubr.f32.mxu0 0.0
        %617 = vmatmul.mubr.f32.gmra.mrb[0].mxu0 %v483
        %v618 = vpop.f32.mrb[0].mxu0
        %v619 = vadd.f32 %v448, %v618
        %v620 = vpop.f32.mrb[0].mxu0
        %621 = vmatprep.mubr.f32.mxu0 0.0
        %622 = vmatmul.mubr.f32.gmra.mrb[0].mxu0 %v486
        %v623 = vpop.f32.mrb[0].mxu0
        %v624 = vadd.f32 %v448, %v623
        %v625 = vpop.f32.mrb[0].mxu0
        %626 = vmatprep.mubr.f32.mxu0 0.0
        %627 = vmatmul.mubr.f32.gmra.mrb[0].mxu0 %v489
        %v628 = vpop.f32.mrb[0].mxu0
        %v629 = vadd.f32 %v448, %v628
        %v630 = vpop.f32.mrb[0].mxu0
        %631 = vmatprep.mubr.f32.mxu0 0.0
        %632 = vmatmul.mubr.f32.gmra.mrb[0].mxu0 %v492
        %v633 = vpop.f32.mrb[0].mxu0
        %v634 = vadd.f32 %v448, %v633
        %v635 = vpop.f32.mrb[0].mxu0
        %636 = vmatprep.mubr.f32.mxu0 0.0
        %637 = vmatmul.mubr.f32.gmra.mrb[0].mxu0 %v495
        %v638 = vpop.f32.mrb[0].mxu0
        %v639 = vadd.f32 %v448, %v638
        %v640 = vpop.f32.mrb[0].mxu0
        %641 = vdwg.mxu0
        %v642 = vmax.f32 %v564, 0.0
        %v643 = vmax.f32 %v569, 0.0
        %v644 = vmax.f32 %v574, 0.0
        %v645 = vmax.f32 %v579, 0.0
        %v646 = vmax.f32 %v584, 0.0
        %v647 = vmax.f32 %v589, 0.0
        %v648 = vmax.f32 %v594, 0.0
        %v649 = vmax.f32 %v599, 0.0
        %v650 = vmax.f32 %v604, 0.0
        %v651 = vmax.f32 %v609, 0.0
        %v652 = vmax.f32 %v614, 0.0
        %v653 = vmax.f32 %v619, 0.0
        %v654 = vmax.f32 %v624, 0.0
        %v655 = vmax.f32 %v629, 0.0
        %v656 = vmax.f32 %v634, 0.0
        %v657 = vmax.f32 %v639, 0.0
        %v658 = vld [vmem:[%s2 + $0x20] sm:$0xff]
        %v659 = vld [vmem:[%s2 + $0x28] sm:$0xff]
        %v660 = vld [vmem:[%s2 + $0x30] sm:$0xff]
        %v661 = vld [vmem:[%s2 + $0x38] sm:$0xff]
        %v662 = vld [vmem:[%s2 + $0x40] sm:$0xff]
        %v663 = vld [vmem:[%s2 + $0x48] sm:$0xff]
        %v664 = vld [vmem:[%s2 + $0x50] sm:$0xff]
        %v665 = vld [vmem:[%s2 + $0x58] sm:$0xff]
        %v666 = vld [vmem:[%s2 + $0x60] sm:$0xff]
        %v667 = vld [vmem:[%s2 + $0x68] sm:$0xff]
        %v668 = vld [vmem:[%s2 + $0x70] sm:$0xff]
        %v669 = vld [vmem:[%s2 + $0x78] sm:$0xff]
        %v670 = vld [vmem:[%s2 + $0x80] sm:$0xff]
        %v671 = vld [vmem:[%s2 + $0x88] sm:$0xff]
        %v672 = vld [vmem:[%s2 + $0x90] sm:$0xff]
        %v673 = vld [vmem:[%s2 + $0x98] sm:$0xff]
        %v674 = vld [vmem:[%s1 + $0x3] sm:$0x1]
        %v675 = vlaneseq
        %v676 = vshrl.u32 %v675, 7
        %v677 = vsub.s32 0, %v676
        %v678 = vrot.slane %v674, %v677
        %679 = vmatprep.subr.mxu0 0.0
        %680 = vmatpush1.msra.mxu0 %v658
        %681 = vmatprep.subr.mxu0 0.0
        %682 = vmatpush1.msra.mxu0 %v659
        %683 = vmatprep.subr.mxu0 0.0
        %684 = vmatpush1.msra.mxu0 %v660
        %685 = vmatprep.subr.mxu0 0.0
        %686 = vmatpush1.msra.mxu0 %v661
        %687 = vmatprep.subr.mxu0 0.0
        %688 = vmatpush1.msra.mxu0 %v662
        %689 = vmatprep.subr.mxu0 0.0
        %690 = vmatpush1.msra.mxu0 %v663
        %691 = vmatprep.subr.mxu0 0.0
        %692 = vmatpush1.msra.mxu0 %v664
        %693 = vmatprep.subr.mxu0 0.0
        %694 = vmatpush1.msra.mxu0 %v665
        %695 = vmatprep.subr.mxu0 0.0
        %696 = vmatpush1.msra.mxu0 %v666
        %697 = vmatprep.subr.mxu0 0.0
        %698 = vmatpush1.msra.mxu0 %v667
        %699 = vmatprep.subr.mxu0 0.0
        %700 = vmatpush1.msra.mxu0 %v668
        %701 = vmatprep.subr.mxu0 0.0
        %702 = vmatpush1.msra.mxu0 %v669
        %703 = vmatprep.subr.mxu0 0.0
        %704 = vmatpush1.msra.mxu0 %v670
        %705 = vmatprep.subr.mxu0 0.0
        %706 = vmatpush1.msra.mxu0 %v671
        %707 = vmatprep.subr.mxu0 0.0
        %708 = vmatpush1.msra.mxu0 %v672
        %709 = vmatprep.subr.mxu0 0.0
        %710 = vmatpush1.msra.mxu0 %v673
        %711 = vmatprep.subr.mxu0 0.0
        %712 = vmatpush1.msra.mxu0 0.0
        %713 = vmatprep.subr.mxu0 0.0
        %714 = vmatpush1.msra.mxu0 0.0
        %715 = vmatprep.subr.mxu0 0.0
        %716 = vmatpush1.msra.mxu0 0.0
        %717 = vmatprep.subr.mxu0 0.0
        %718 = vmatpush1.msra.mxu0 0.0
        %719 = vmatprep.subr.mxu0 0.0
        %720 = vmatpush1.msra.mxu0 0.0
        %721 = vmatprep.subr.mxu0 0.0
        %722 = vmatpush1.msra.mxu0 0.0
        %723 = vmatprep.subr.mxu0 0.0
        %724 = vmatpush1.msra.mxu0 0.0
        %725 = vmatprep.subr.mxu0 0.0
        %726 = vmatpush1.msra.mxu0 0.0
        %727 = vmatprep.subr.mxu0 0.0
        %728 = vmatpush1.msra.mxu0 0.0
        %729 = vmatprep.subr.mxu0 0.0
        %730 = vmatpush1.msra.mxu0 0.0
        %731 = vmatprep.subr.mxu0 0.0
        %732 = vmatpush1.msra.mxu0 0.0
        %733 = vmatprep.subr.mxu0 0.0
        %734 = vmatpush1.msra.mxu0 0.0
        %735 = vmatprep.subr.mxu0 0.0
        %736 = vmatpush1.msra.mxu0 0.0
        %737 = vmatprep.subr.mxu0 0.0
        %738 = vmatpush1.msra.mxu0 0.0
        %739 = vmatprep.subr.mxu0 0.0
        %740 = vmatpush1.msra.mxu0 0.0
        %741 = vmatprep.subr.mxu0 0.0
        %742 = vmatpush1.msra.mxu0 0.0
        %743 = vmatprep.mubr.f32.mxu0 0.0
        %744 = vmatmul.mubr.f32.gmra.mrb[0].mxu0 %v642
        %v745 = vpop.f32.mrb[0].mxu0
        %v746 = vadd.f32 %v678, %v745
        %v747 = vpop.f32.mrb[0].mxu0
        %748 = vmatprep.mubr.f32.mxu0 0.0
        %749 = vmatmul.mubr.f32.gmra.mrb[0].mxu0 %v643
        %v750 = vpop.f32.mrb[0].mxu0
        %v751 = vadd.f32 %v678, %v750
        %v752 = vpop.f32.mrb[0].mxu0
        %753 = vmatprep.mubr.f32.mxu0 0.0
        %754 = vmatmul.mubr.f32.gmra.mrb[0].mxu0 %v644
        %v755 = vpop.f32.mrb[0].mxu0
        %v756 = vadd.f32 %v678, %v755
        %v757 = vpop.f32.mrb[0].mxu0
        %758 = vmatprep.mubr.f32.mxu0 0.0
        %759 = vmatmul.mubr.f32.gmra.mrb[0].mxu0 %v645
        %v760 = vpop.f32.mrb[0].mxu0
        %v761 = vadd.f32 %v678, %v760
        %v762 = vpop.f32.mrb[0].mxu0
        %763 = vmatprep.mubr.f32.mxu0 0.0
        %764 = vmatmul.mubr.f32.gmra.mrb[0].mxu0 %v646
        %v765 = vpop.f32.mrb[0].mxu0
        %v766 = vadd.f32 %v678, %v765
        %v767 = vpop.f32.mrb[0].mxu0
        %768 = vmatprep.mubr.f32.mxu0 0.0
        %769 = vmatmul.mubr.f32.gmra.mrb[0].mxu0 %v647
        %v770 = vpop.f32.mrb[0].mxu0
        %v771 = vadd.f32 %v678, %v770
        %v772 = vpop.f32.mrb[0].mxu0
        %773 = vmatprep.mubr.f32.mxu0 0.0
        %774 = vmatmul.mubr.f32.gmra.mrb[0].mxu0 %v648
        %v775 = vpop.f32.mrb[0].mxu0
        %v776 = vadd.f32 %v678, %v775
        %v777 = vpop.f32.mrb[0].mxu0
        %778 = vmatprep.mubr.f32.mxu0 0.0
        %779 = vmatmul.mubr.f32.gmra.mrb[0].mxu0 %v649
        %v780 = vpop.f32.mrb[0].mxu0
        %v781 = vadd.f32 %v678, %v780
        %v782 = vpop.f32.mrb[0].mxu0
        %783 = vmatprep.mubr.f32.mxu0 0.0
        %784 = vmatmul.mubr.f32.gmra.mrb[0].mxu0 %v650
        %v785 = vpop.f32.mrb[0].mxu0
        %v786 = vadd.f32 %v678, %v785
        %v787 = vpop.f32.mrb[0].mxu0
        %788 = vmatprep.mubr.f32.mxu0 0.0
        %789 = vmatmul.mubr.f32.gmra.mrb[0].mxu0 %v651
        %v790 = vpop.f32.mrb[0].mxu0
        %v791 = vadd.f32 %v678, %v790
        %v792 = vpop.f32.mrb[0].mxu0
        %793 = vmatprep.mubr.f32.mxu0 0.0
        %794 = vmatmul.mubr.f32.gmra.mrb[0].mxu0 %v652
        %v795 = vpop.f32.mrb[0].mxu0
        %v796 = vadd.f32 %v678, %v795
        %v797 = vpop.f32.mrb[0].mxu0
        %798 = vmatprep.mubr.f32.mxu0 0.0
        %799 = vmatmul.mubr.f32.gmra.mrb[0].mxu0 %v653
        %v800 = vpop.f32.mrb[0].mxu0
        %v801 = vadd.f32 %v678, %v800
        %v802 = vpop.f32.mrb[0].mxu0
        %803 = vmatprep.mubr.f32.mxu0 0.0
        %804 = vmatmul.mubr.f32.gmra.mrb[0].mxu0 %v654
        %v805 = vpop.f32.mrb[0].mxu0
        %v806 = vadd.f32 %v678, %v805
        %v807 = vpop.f32.mrb[0].mxu0
        %808 = vmatprep.mubr.f32.mxu0 0.0
        %809 = vmatmul.mubr.f32.gmra.mrb[0].mxu0 %v655
        %v810 = vpop.f32.mrb[0].mxu0
        %v811 = vadd.f32 %v678, %v810
        %v812 = vpop.f32.mrb[0].mxu0
        %813 = vmatprep.mubr.f32.mxu0 0.0
        %814 = vmatmul.mubr.f32.gmra.mrb[0].mxu0 %v656
        %v815 = vpop.f32.mrb[0].mxu0
        %v816 = vadd.f32 %v678, %v815
        %v817 = vpop.f32.mrb[0].mxu0
        %818 = vmatprep.mubr.f32.mxu0 0.0
        %819 = vmatmul.mubr.f32.gmra.mrb[0].mxu0 %v657
        %v820 = vpop.f32.mrb[0].mxu0
        %v821 = vadd.f32 %v678, %v820
        %v822 = vpop.f32.mrb[0].mxu0
        %823 = vdwg.mxu0
        %v824 = vmax.f32 %v746, 0.0
        %v825 = vmax.f32 %v751, 0.0
        %v826 = vmax.f32 %v756, 0.0
        %v827 = vmax.f32 %v761, 0.0
        %v828 = vmax.f32 %v766, 0.0
        %v829 = vmax.f32 %v771, 0.0
        %v830 = vmax.f32 %v776, 0.0
        %v831 = vmax.f32 %v781, 0.0
        %v832 = vmax.f32 %v786, 0.0
        %v833 = vmax.f32 %v791, 0.0
        %v834 = vmax.f32 %v796, 0.0
        %v835 = vmax.f32 %v801, 0.0
        %v836 = vmax.f32 %v806, 0.0
        %v837 = vmax.f32 %v811, 0.0
        %v838 = vmax.f32 %v816, 0.0
        %v839 = vmax.f32 %v821, 0.0
        %v840 = vld [vmem:[%s2 + $0xa0] sm:$0xff]
        %v841 = vld [vmem:[%s2 + $0xa8] sm:$0xff]
        %v842 = vld [vmem:[%s2 + $0xb0] sm:$0xff]
        %v843 = vld [vmem:[%s2 + $0xb8] sm:$0xff]
        %v844 = vld [vmem:[%s2 + $0xc0] sm:$0xff]
        %v845 = vld [vmem:[%s2 + $0xc8] sm:$0xff]
        %v846 = vld [vmem:[%s2 + $0xd0] sm:$0xff]
        %v847 = vld [vmem:[%s2 + $0xd8] sm:$0xff]
        %v848 = vld [vmem:[%s2 + $0xe0] sm:$0xff]
        %v849 = vld [vmem:[%s2 + $0xe8] sm:$0xff]
        %v850 = vld [vmem:[%s2 + $0xf0] sm:$0xff]
        %v851 = vld [vmem:[%s2 + $0xf8] sm:$0xff]
        %v852 = vld [vmem:[%s2 + $0x100] sm:$0xff]
        %v853 = vld [vmem:[%s2 + $0x108] sm:$0xff]
        %v854 = vld [vmem:[%s2 + $0x110] sm:$0xff]
        %v855 = vld [vmem:[%s2 + $0x118] sm:$0xff]
        %v856 = vld [vmem:[%s1 + $0x4] sm:$0x1]
        %v857 = vlaneseq
        %v858 = vshrl.u32 %v857, 7
        %v859 = vsub.s32 0, %v858
        %v860 = vrot.slane %v856, %v859
        %861 = vmatprep.subr.mxu0 0.0
        %862 = vmatpush1.msra.mxu0 %v840
        %863 = vmatprep.subr.mxu0 0.0
        %864 = vmatpush1.msra.mxu0 %v841
        %865 = vmatprep.subr.mxu0 0.0
        %866 = vmatpush1.msra.mxu0 %v842
        %867 = vmatprep.subr.mxu0 0.0
        %868 = vmatpush1.msra.mxu0 %v843
        %869 = vmatprep.subr.mxu0 0.0
        %870 = vmatpush1.msra.mxu0 %v844
        %871 = vmatprep.subr.mxu0 0.0
        %872 = vmatpush1.msra.mxu0 %v845
        %873 = vmatprep.subr.mxu0 0.0
        %874 = vmatpush1.msra.mxu0 %v846
        %875 = vmatprep.subr.mxu0 0.0
        %876 = vmatpush1.msra.mxu0 %v847
        %877 = vmatprep.subr.mxu0 0.0
        %878 = vmatpush1.msra.mxu0 %v848
        %879 = vmatprep.subr.mxu0 0.0
        %880 = vmatpush1.msra.mxu0 %v849
        %881 = vmatprep.subr.mxu0 0.0
        %882 = vmatpush1.msra.mxu0 %v850
        %883 = vmatprep.subr.mxu0 0.0
        %884 = vmatpush1.msra.mxu0 %v851
        %885 = vmatprep.subr.mxu0 0.0
        %886 = vmatpush1.msra.mxu0 %v852
        %887 = vmatprep.subr.mxu0 0.0
        %888 = vmatpush1.msra.mxu0 %v853
        %889 = vmatprep.subr.mxu0 0.0
        %890 = vmatpush1.msra.mxu0 %v854
        %891 = vmatprep.subr.mxu0 0.0
        %892 = vmatpush1.msra.mxu0 %v855
        %893 = vmatprep.subr.mxu0 0.0
        %894 = vmatpush1.msra.mxu0 0.0
        %895 = vmatprep.subr.mxu0 0.0
        %896 = vmatpush1.msra.mxu0 0.0
        %897 = vmatprep.subr.mxu0 0.0
        %898 = vmatpush1.msra.mxu0 0.0
        %899 = vmatprep.subr.mxu0 0.0
        %900 = vmatpush1.msra.mxu0 0.0
        %901 = vmatprep.subr.mxu0 0.0
        %902 = vmatpush1.msra.mxu0 0.0
        %903 = vmatprep.subr.mxu0 0.0
        %904 = vmatpush1.msra.mxu0 0.0
        %905 = vmatprep.subr.mxu0 0.0
        %906 = vmatpush1.msra.mxu0 0.0
        %907 = vmatprep.subr.mxu0 0.0
        %908 = vmatpush1.msra.mxu0 0.0
        %909 = vmatprep.subr.mxu0 0.0
        %910 = vmatpush1.msra.mxu0 0.0
        %911 = vmatprep.subr.mxu0 0.0
        %912 = vmatpush1.msra.mxu0 0.0
        %913 = vmatprep.subr.mxu0 0.0
        %914 = vmatpush1.msra.mxu0 0.0
        %915 = vmatprep.subr.mxu0 0.0
        %916 = vmatpush1.msra.mxu0 0.0
        %917 = vmatprep.subr.mxu0 0.0
        %918 = vmatpush1.msra.mxu0 0.0
        %919 = vmatprep.subr.mxu0 0.0
        %920 = vmatpush1.msra.mxu0 0.0
        %921 = vmatprep.subr.mxu0 0.0
        %922 = vmatpush1.msra.mxu0 0.0
        %923 = vmatprep.subr.mxu0 0.0
        %924 = vmatpush1.msra.mxu0 0.0
        %925 = vmatprep.mubr.f32.mxu0 0.0
        %926 = vmatmul.mubr.f32.gmra.mrb[0].mxu0 %v824
        %v927 = vpop.f32.mrb[0].mxu0
        %v928 = vadd.f32 %v860, %v927
        %v929 = vpop.f32.mrb[0].mxu0
        %930 = vmatprep.mubr.f32.mxu0 0.0
        %931 = vmatmul.mubr.f32.gmra.mrb[0].mxu0 %v825
        %v932 = vpop.f32.mrb[0].mxu0
        %v933 = vadd.f32 %v860, %v932
        %v934 = vpop.f32.mrb[0].mxu0
        %935 = vmatprep.mubr.f32.mxu0 0.0
        %936 = vmatmul.mubr.f32.gmra.mrb[0].mxu0 %v826
        %v937 = vpop.f32.mrb[0].mxu0
        %v938 = vadd.f32 %v860, %v937
        %v939 = vpop.f32.mrb[0].mxu0
        %940 = vmatprep.mubr.f32.mxu0 0.0
        %941 = vmatmul.mubr.f32.gmra.mrb[0].mxu0 %v827
        %v942 = vpop.f32.mrb[0].mxu0
        %v943 = vadd.f32 %v860, %v942
        %v944 = vpop.f32.mrb[0].mxu0
        %945 = vmatprep.mubr.f32.mxu0 0.0
        %946 = vmatmul.mubr.f32.gmra.mrb[0].mxu0 %v828
        %v947 = vpop.f32.mrb[0].mxu0
        %v948 = vadd.f32 %v860, %v947
        %v949 = vpop.f32.mrb[0].mxu0
        %950 = vmatprep.mubr.f32.mxu0 0.0
        %951 = vmatmul.mubr.f32.gmra.mrb[0].mxu0 %v829
        %v952 = vpop.f32.mrb[0].mxu0
        %v953 = vadd.f32 %v860, %v952
        %v954 = vpop.f32.mrb[0].mxu0
        %955 = vmatprep.mubr.f32.mxu0 0.0
        %956 = vmatmul.mubr.f32.gmra.mrb[0].mxu0 %v830
        %v957 = vpop.f32.mrb[0].mxu0
        %v958 = vadd.f32 %v860, %v957
        %v959 = vpop.f32.mrb[0].mxu0
        %960 = vmatprep.mubr.f32.mxu0 0.0
        %961 = vmatmul.mubr.f32.gmra.mrb[0].mxu0 %v831
        %v962 = vpop.f32.mrb[0].mxu0
        %v963 = vadd.f32 %v860, %v962
        %v964 = vpop.f32.mrb[0].mxu0
        %965 = vmatprep.mubr.f32.mxu0 0.0
        %966 = vmatmul.mubr.f32.gmra.mrb[0].mxu0 %v832
        %v967 = vpop.f32.mrb[0].mxu0
        %v968 = vadd.f32 %v860, %v967
        %v969 = vpop.f32.mrb[0].mxu0
        %970 = vmatprep.mubr.f32.mxu0 0.0
        %971 = vmatmul.mubr.f32.gmra.mrb[0].mxu0 %v833
        %v972 = vpop.f32.mrb[0].mxu0
        %v973 = vadd.f32 %v860, %v972
        %v974 = vpop.f32.mrb[0].mxu0
        %975 = vmatprep.mubr.f32.mxu0 0.0
        %976 = vmatmul.mubr.f32.gmra.mrb[0].mxu0 %v834
        %v977 = vpop.f32.mrb[0].mxu0
        %v978 = vadd.f32 %v860, %v977
        %v979 = vpop.f32.mrb[0].mxu0
        %980 = vmatprep.mubr.f32.mxu0 0.0
        %981 = vmatmul.mubr.f32.gmra.mrb[0].mxu0 %v835
        %v982 = vpop.f32.mrb[0].mxu0
        %v983 = vadd.f32 %v860, %v982
        %v984 = vpop.f32.mrb[0].mxu0
        %985 = vmatprep.mubr.f32.mxu0 0.0
        %986 = vmatmul.mubr.f32.gmra.mrb[0].mxu0 %v836
        %v987 = vpop.f32.mrb[0].mxu0
        %v988 = vadd.f32 %v860, %v987
        %v989 = vpop.f32.mrb[0].mxu0
        %990 = vmatprep.mubr.f32.mxu0 0.0
        %991 = vmatmul.mubr.f32.gmra.mrb[0].mxu0 %v837
        %v992 = vpop.f32.mrb[0].mxu0
        %v993 = vadd.f32 %v860, %v992
        %v994 = vpop.f32.mrb[0].mxu0
        %995 = vmatprep.mubr.f32.mxu0 0.0
        %996 = vmatmul.mubr.f32.gmra.mrb[0].mxu0 %v838
        %v997 = vpop.f32.mrb[0].mxu0
        %v998 = vadd.f32 %v860, %v997
        %v999 = vpop.f32.mrb[0].mxu0
        %1000 = vmatprep.mubr.f32.mxu0 0.0
        %1001 = vmatmul.mubr.f32.gmra.mrb[0].mxu0 %v839
        %v1002 = vpop.f32.mrb[0].mxu0
        %v1003 = vadd.f32 %v860, %v1002
        %v1004 = vpop.f32.mrb[0].mxu0
        %1005 = vdwg.mxu0
        %v1006 = vld [vmem:[%s1 + $0x5] sm:$0x1]
        %vm1007 = vcmp.gt.f32.partialorder %v1006, 0.5
        %v1008 = vtanh.pop %v928
        %v1009 = vtanh.pop %v933
        %v1010 = vtanh.pop %v938
        %v1011 = vtanh.pop %v943
        %v1012 = vtanh.pop %v948
        %v1013 = vtanh.pop %v953
        %v1014 = vtanh.pop %v958
        %v1015 = vtanh.pop %v963
        %v1016 = vtanh.pop %v968
        %v1017 = vtanh.pop %v973
        %v1018 = vtanh.pop %v978
        %v1019 = vtanh.pop %v983
        %v1020 = vtanh.pop %v988
        %v1021 = vtanh.pop %v993
        %v1022 = vtanh.pop %v998
        %v1023 = vtanh.pop %v1003
        %v1024 = vmax.f32 %v928, 0.0
        %v1025 = vmax.f32 %v933, 0.0
        %v1026 = vmax.f32 %v938, 0.0
        %v1027 = vmax.f32 %v943, 0.0
        %v1028 = vmax.f32 %v948, 0.0
        %v1029 = vmax.f32 %v953, 0.0
        %v1030 = vmax.f32 %v958, 0.0
        %v1031 = vmax.f32 %v963, 0.0
        %v1032 = vmax.f32 %v968, 0.0
        %v1033 = vmax.f32 %v973, 0.0
        %v1034 = vmax.f32 %v978, 0.0
        %v1035 = vmax.f32 %v983, 0.0
        %v1036 = vmax.f32 %v988, 0.0
        %v1037 = vmax.f32 %v993, 0.0
        %v1038 = vmax.f32 %v998, 0.0
        %v1039 = vmax.f32 %v1003, 0.0
        %v1040 = vadd.f32 %v1024, 1e-05
        %v1041 = vadd.f32 %v1025, 1e-05
        %v1042 = vadd.f32 %v1026, 1e-05
        %v1043 = vadd.f32 %v1027, 1e-05
        %v1044 = vadd.f32 %v1028, 1e-05
        %v1045 = vadd.f32 %v1029, 1e-05
        %v1046 = vadd.f32 %v1030, 1e-05
        %v1047 = vadd.f32 %v1031, 1e-05
        %v1048 = vadd.f32 %v1032, 1e-05
        %v1049 = vadd.f32 %v1033, 1e-05
        %v1050 = vadd.f32 %v1034, 1e-05
        %v1051 = vadd.f32 %v1035, 1e-05
        %v1052 = vadd.f32 %v1036, 1e-05
        %v1053 = vadd.f32 %v1037, 1e-05
        %v1054 = vadd.f32 %v1038, 1e-05
        %v1055 = vadd.f32 %v1039, 1e-05
        %v1056 = vsel %vm1007, 1, 0
        %v1057 = vlaneseq
        %v1058 = vshrl.u32 %v1057, 7
        %v1059 = vsub.s32 0, %v1058
        %v1060 = vrot.slane %v1056, %v1059
        %vm1061 = vcmp.eq.s32.totalorder %v1060, 1
        %v1062 = vsel %vm1061, %v1008, %v1040
        %v1063 = vsel %vm1061, %v1009, %v1041
        %v1064 = vsel %vm1061, %v1010, %v1042
        %v1065 = vsel %vm1061, %v1011, %v1043
        %v1066 = vsel %vm1061, %v1012, %v1044
        %v1067 = vsel %vm1061, %v1013, %v1045
        %v1068 = vsel %vm1061, %v1014, %v1046
        %v1069 = vsel %vm1061, %v1015, %v1047
        %v1070 = vsel %vm1061, %v1016, %v1048
        %v1071 = vsel %vm1061, %v1017, %v1049
        %v1072 = vsel %vm1061, %v1018, %v1050
        %v1073 = vsel %vm1061, %v1019, %v1051
        %v1074 = vsel %vm1061, %v1020, %v1052
        %v1075 = vsel %vm1061, %v1021, %v1053
        %v1076 = vsel %vm1061, %v1022, %v1054
        %v1077 = vsel %vm1061, %v1023, %v1055
        %1078 = vst [vmem:[%s164] sm:$0xff] %v1062
        %1079 = vst [vmem:[%s164 + $0x8] sm:$0xff] %v1063
        %1080 = vst [vmem:[%s164 + $0x10] sm:$0xff] %v1064
        %1081 = vst [vmem:[%s164 + $0x18] sm:$0xff] %v1065
        %1082 = vst [vmem:[%s164 + $0x20] sm:$0xff] %v1066
        %1083 = vst [vmem:[%s164 + $0x28] sm:$0xff] %v1067
        %1084 = vst [vmem:[%s164 + $0x30] sm:$0xff] %v1068
        %1085 = vst [vmem:[%s164 + $0x38] sm:$0xff] %v1069
        %1086 = vst [vmem:[%s164 + $0x40] sm:$0xff] %v1070
        %1087 = vst [vmem:[%s164 + $0x48] sm:$0xff] %v1071
        %1088 = vst [vmem:[%s164 + $0x50] sm:$0xff] %v1072
        %1089 = vst [vmem:[%s164 + $0x58] sm:$0xff] %v1073
        %1090 = vst [vmem:[%s164 + $0x60] sm:$0xff] %v1074
        %1091 = vst [vmem:[%s164 + $0x68] sm:$0xff] %v1075
        %1092 = vst [vmem:[%s164 + $0x70] sm:$0xff] %v1076
        %1093 = vst [vmem:[%s164 + $0x78] sm:$0xff] %v1077
        %s1094 = sand.u32 %s93, 1
        %s1095 = scalar_lea.sflag [#allocation3], %s1094
        %s1096 = sand.u32 %s93, 1
        %s1097 = smul.addr %s1096, 128
        %s1098 = scalar_lea.vmem [#allocation2], %s1097
        // Predicated region
        $region33: #{tpu_custom_call.1} parent=31 // pred_check
          %p1099 = pneg %p103
        $region34: #{tpu_custom_call.1} parent=31 // pred_check_branch
          %1101 = sbr.rel (%p1099) target = $region36
        $region35: #{tpu_custom_call.1} parent=31 // pred_region
          %s1102 = smul.u32 16, %s17
          %s1104 = ssub.s32 2048, 2048
          %1105 = vsyncadd %s1095, %s1104
          %s1106 = smul.addr %s1102, 128
          %s1107 = scalar_lea.hbm %s3, %s1106
          %s1108 = sshll.u32 %s1098, 4
          %s1109 = int_to_ptr.vmem [resolvable:$true] %s1108
          %1114 = dma.vmem_to_hbm [thread:$0]  %s1109, 2048, %s1107, %s1095, 128, 128, 8
        $region36: #{tpu_custom_call.1} parent=31 // pred_fallthru
          _
      $region32: #{tpu_custom_call.1} parent=5 // pred_fallthru
        _
      %p1115 = scmp.le.s32.totalorder 2, %s12
      // Predicated region
      $region37: #{tpu_custom_call.1} parent=5 // pred_check
        %p1116 = pneg %p1115
      $region38: #{tpu_custom_call.1} parent=5 // pred_check_branch
        %1118 = sbr.rel (%p1116) target = $region40
      $region39: #{tpu_custom_call.1} parent=5 // pred_region
        %s1119 = ssub.s32 %s12, 2
        // Predicated region
        $region41: #{tpu_custom_call.1} parent=39 // pred_check
          %p1120 = pneg %p109
        $region42: #{tpu_custom_call.1} parent=39 // pred_check_branch
          %1122 = sbr.rel (%p1120) target = $region44
        $region43: #{tpu_custom_call.1} parent=39 // pred_region
          %s1123 = sand.u32 %s94, 1
          %s1124 = scalar_lea.sflag [#allocation3], %s1123
          %s1125 = sand.u32 %s94, 1
          %s1126 = smul.addr %s1125, 128
          %s1127 = scalar_lea.vmem [#allocation2], %s1126
          %1128 = dma.done %s1124, 2048
        $region44: #{tpu_custom_call.1} parent=39 // pred_fallthru
          _
      $region40: #{tpu_custom_call.1} parent=5 // pred_fallthru
        _
    $region6: #{tpu_custom_call.1} parent=1 // loop_footer
      %s16 = sadd.s32 1, %s12
    $region7: #{tpu_custom_call.1} parent=1 // loop_footer_branch
      %11 = sbr.rel target = $region3
    $region8: #{tpu_custom_call.1} parent=1 // loop_exit
      _
    %1129 = vsyncpa [#allocation3], 1
    %s1130 = scalar_lea.sflag [#allocation3], 1
    %1131 = vsyncpa %s1130, 1

</llo_original>
